<compile_context>
chip_gen: v5e
topology: v5e:2x2
jax: 0.10.0
libtpu: 0.0.40
codegen_flags: <defaults>
</compile_context>

<pallas_src>
import functools

import jax
import jax.numpy as jnp
from jax import lax
from jax.experimental import pallas as pl
from jax.experimental.pallas import tpu as pltpu


def _tv_partial_kernel(x_ref, out_ref, *, h, w):
    """One grid step: TB flattened planes -> two partial TV sums.

    x_ref:   (1, TB, H*W) block of the input (original dtype, lane-dense).
    out_ref: (1, 2, 8, 128) float32; [0, 0] = vertical partial sum,
             [0, 1] = horizontal partial sum.
    """
    x = x_ref[0].astype(jnp.float32)                 # (TB, P)
    tb, p = x.shape

    # Vertical (H-direction) differences: flat index i pairs with i + W.
    if h > 1:
        dv = x[:, w:] - x[:, : p - w]                # (TB, (H-1)*W)
        h_part = jnp.sum(dv * dv)
    else:
        h_part = jnp.float32(0.0)

    # Horizontal (W-direction) differences: adjacent flat indices; zero out
    # the wrap between image rows (positions where col % W == W-1).  The mask
    # depends only on the lane index, so build it at (1, P-1) and let the
    # multiply broadcast it across the TB sublane rows.
    if w > 1:
        dh = x[:, 1:] - x[:, : p - 1]                # (TB, P-1)
        col = lax.broadcasted_iota(jnp.int32, (1, p - 1), 1)
        keep = (col % w != (w - 1)).astype(jnp.float32)
        dh = dh * keep
        w_part = jnp.sum(dh * dh)
    else:
        w_part = jnp.float32(0.0)

    out_ref[0, 0, :, :] = jnp.broadcast_to(h_part.reshape(1, 1), (8, 128))
    out_ref[0, 1, :, :] = jnp.broadcast_to(w_part.reshape(1, 1), (8, 128))


def _planes_per_block(n: int, p: int, block_bytes: int) -> int:
    """Pick TB: a divisor of n whose f32 block is close to block_bytes."""
    target = max(1, block_bytes // (p * 4))
    if target >= n:
        return n
    best_lo, best_hi = 1, None
    for d in range(1, n + 1):
        if n % d:
            continue
        if d <= target:
            best_lo = d
        elif best_hi is None:
            best_hi = d
    # If the divisor below target wastes most of the budget and the next one
    # up still fits a modest VMEM footprint, take the bigger block.
    if (best_hi is not None and best_lo * 2 <= target
            and best_hi * p * 4 <= 2 * block_bytes):
        return best_hi
    return best_lo


def l_smo(x1: jax.Array, *, block_bytes: int = 2 * 1024 * 1024) -> jax.Array:
    """Pallas TPU implementation of L_SMO.forward (TV smoothness loss).

    x1: (B, C, H, W) array (NCHW, matching the PyTorch module).
    Returns a scalar float32.
    """
    b, c, h, w = x1.shape
    n = b * c
    p = h * w
    count_h = (h - 1) * w
    count_w = h * (w - 1)

    tb = _planes_per_block(n, p, block_bytes)
    g = n // tb

    # Contiguous reshape (no data movement): (B, C, H, W) -> (G, TB, H*W).
    x2 = x1.reshape(g, tb, p)

    kernel = functools.partial(_tv_partial_kernel, h=h, w=w)

    in_block_bytes = tb * p * jnp.dtype(x1.dtype).itemsize
    f32_block_bytes = tb * p * 4
    vmem_limit = int(
        min(64 * 1024 * 1024,
            max(32 * 1024 * 1024, 2 * in_block_bytes + 8 * f32_block_bytes))
    )

    partials = pl.pallas_call(
        kernel,
        out_shape=jax.ShapeDtypeStruct((g, 2, 8, 128), jnp.float32),
        grid_spec=pltpu.PrefetchScalarGridSpec(
            num_scalar_prefetch=0,
            grid=(g,),
            in_specs=[pl.BlockSpec((1, tb, p), lambda i: (i, 0, 0))],
            out_specs=pl.BlockSpec((1, 2, 8, 128), lambda i: (i, 0, 0, 0)),
        ),
        compiler_params=pltpu.CompilerParams(
            dimension_semantics=("parallel",),   # independent blocks
            vmem_limit_bytes=vmem_limit,
        ),
    )(x2)

    # Tiny final reduction + normalization (G scalars each) outside the kernel.
    h_tv = jnp.sum(partials[:, 0, 0, 0])
    w_tv = jnp.sum(partials[:, 1, 0, 0])
    return (
        2.0
        * (h_tv / jnp.float32(count_h) + w_tv / jnp.float32(count_w))
        / jnp.float32(b)
    )


def l_smo_reference(x1: jax.Array) -> jax.Array:
    """Plain-JAX reference identical to the PyTorch forward."""
    b, _, h, w = x1.shape
    count_h = (h - 1) * w
    count_w = h * (w - 1)
    x = x1.astype(jnp.float32)
    h_tv = jnp.sum(jnp.square(x[:, :, 1:, :] - x[:, :, : h - 1, :]))
    w_tv = jnp.sum(jnp.square(x[:, :, :, 1:] - x[:, :, :, : w - 1]))
    return 2.0 * (h_tv / count_h + w_tv / count_w) / b


if __name__ == "__main__":
    key = jax.random.PRNGKey(0)

    # Primary test: NCHW input B=2, C=4, H=16, W=16 (f32).
    x = jax.random.uniform(key, (2, 4, 16, 16), dtype=jnp.float32)
    loss = jax.block_until_ready(l_smo(x))
    ref = jax.block_until_ready(l_smo_reference(x))
    assert jnp.allclose(loss, ref, rtol=1e-5, atol=1e-6), (loss, ref)

    # Secondary test: narrow non-128-multiple width, bf16 input.
    key2 = jax.random.PRNGKey(1)
    y = jax.random.uniform(key2, (1, 3, 24, 40), dtype=jnp.float32).astype(jnp.bfloat16)
    loss2 = jax.block_until_ready(l_smo(y))
    ref2 = jax.block_until_ready(l_smo_reference(y))
    assert jnp.allclose(loss2, ref2, rtol=1e-4, atol=1e-5), (loss2, ref2)

    print("KERNEL_OK")
</pallas_src>

<mosaic_0001>
module attributes {stable_mosaic.version = 11 : i64} {
  func.func @_tv_partial_kernel(%arg0: i32, %arg1: memref<1x8x256xf32, #tpu.memory_space<vmem>>, %arg2: memref<1x2x8x128xf32, #tpu.memory_space<vmem>>) attributes {dimension_semantics = [#tpu.dimension_semantics<parallel>], iteration_bounds = array<i64: 1>, scalar_prefetch = 0 : i64, scratch_operands = 0 : i64, tpu.core_type = #tpu.core_type<tc>, window_params = [{transform_indices = @transform_0, window_bounds = array<i64: 1, 8, 256>}, {transform_indices = @transform_1, window_bounds = array<i64: 1, 2, 8, 128>}]} {
    %c0 = arith.constant 0 : index
    %c0_0 = arith.constant 0 : index
    %c0_1 = arith.constant 0 : index
    %0 = vector.load %arg1[%c0, %c0_0, %c0_1] : memref<1x8x256xf32, #tpu.memory_space<vmem>>, vector<1x8x256xf32>
    %1 = vector.shape_cast %0 : vector<1x8x256xf32> to vector<8x256xf32>
    %2 = vector.extract_strided_slice %1 {offsets = [0, 16], sizes = [8, 240], strides = [1, 1]} : vector<8x256xf32> to vector<8x240xf32>
    %3 = vector.extract_strided_slice %1 {offsets = [0, 0], sizes = [8, 240], strides = [1, 1]} : vector<8x256xf32> to vector<8x240xf32>
    %4 = arith.subf %2, %3 : vector<8x240xf32>
    %5 = arith.mulf %4, %4 : vector<8x240xf32>
    %6 = vector.shape_cast %5 : vector<8x240xf32> to vector<1x8x240xf32>
    %cst = arith.constant dense<0.000000e+00> : vector<1xf32>
    %7 = vector.multi_reduction <add>, %6, %cst [1, 2] : vector<1x8x240xf32> to vector<1xf32>
    %8 = vector.shape_cast %7 : vector<1xf32> to vector<1x1x1xf32>
    %9 = vector.extract %8[0, 0, 0] : f32 from vector<1x1x1xf32>
    %10 = vector.extract_strided_slice %1 {offsets = [0, 1], sizes = [8, 255], strides = [1, 1]} : vector<8x256xf32> to vector<8x255xf32>
    %11 = vector.extract_strided_slice %1 {offsets = [0, 0], sizes = [8, 255], strides = [1, 1]} : vector<8x256xf32> to vector<8x255xf32>
    %12 = arith.subf %10, %11 : vector<8x255xf32>
    %13 = tpu.iota {dimensions = array<i32: 1>} : vector<1x255xi32>
    %c16_i32 = arith.constant 16 : i32
    %c0_i32 = arith.constant 0 : i32
    %14 = arith.cmpi eq, %c16_i32, %c0_i32 : i32
    %c1_i32 = arith.constant 1 : i32
    %15 = arith.select %14, %c1_i32, %c16_i32 : i32
    %16 = vector.broadcast %15 : i32 to vector<1x255xi32>
    %17 = arith.remsi %13, %16 : vector<1x255xi32>
    %c0_i32_2 = arith.constant 0 : i32
    %18 = vector.broadcast %c0_i32_2 : i32 to vector<1x255xi32>
    %19 = arith.cmpi ne, %17, %18 : vector<1x255xi32>
    %c0_i32_3 = arith.constant 0 : i32
    %20 = vector.broadcast %c0_i32_3 : i32 to vector<1x255xi32>
    %21 = arith.cmpi slt, %17, %20 : vector<1x255xi32>
    %c0_i32_4 = arith.constant 0 : i32
    %22 = arith.cmpi slt, %15, %c0_i32_4 : i32
    %23 = vector.broadcast %22 : i1 to vector<1x255xi1>
    %24 = vector.broadcast %23 : vector<1x255xi1> to vector<1x255xi1>
    %25 = arith.xori %21, %24 : vector<1x255xi1>
    %26 = arith.andi %25, %19 : vector<1x255xi1>
    %27 = vector.broadcast %15 : i32 to vector<1x255xi32>
    %28 = arith.addi %17, %27 : vector<1x255xi32>
    %29 = arith.select %26, %28, %17 : vector<1x255xi1>, vector<1x255xi32>
    %c15_i32 = arith.constant 15 : i32
    %30 = vector.broadcast %c15_i32 : i32 to vector<1x255xi32>
    %31 = arith.cmpi ne, %29, %30 : vector<1x255xi32>
    %32 = arith.extui %31 : vector<1x255xi1> to vector<1x255xi32>
    %33 = arith.sitofp %32 : vector<1x255xi32> to vector<1x255xf32>
    %34 = vector.broadcast %33 : vector<1x255xf32> to vector<8x255xf32>
    %35 = arith.mulf %12, %34 : vector<8x255xf32>
    %36 = arith.mulf %35, %35 : vector<8x255xf32>
    %37 = vector.shape_cast %36 : vector<8x255xf32> to vector<1x8x255xf32>
    %cst_5 = arith.constant dense<0.000000e+00> : vector<1xf32>
    %38 = vector.multi_reduction <add>, %37, %cst_5 [1, 2] : vector<1x8x255xf32> to vector<1xf32>
    %39 = vector.shape_cast %38 : vector<1xf32> to vector<1x1x1xf32>
    %40 = vector.extract %39[0, 0, 0] : f32 from vector<1x1x1xf32>
    %41 = vector.broadcast %9 : f32 to vector<1x1xf32>
    %42 = vector.shape_cast %41 : vector<1x1xf32> to vector<1x1xf32>
    %43 = vector.broadcast %42 : vector<1x1xf32> to vector<8x128xf32>
    %c0_6 = arith.constant 0 : index
    %c0_7 = arith.constant 0 : index
    %c0_8 = arith.constant 0 : index
    %c0_9 = arith.constant 0 : index
    %44 = vector.load %arg2[%c0_6, %c0_7, %c0_8, %c0_9] : memref<1x2x8x128xf32, #tpu.memory_space<vmem>>, vector<1x1x8x128xf32>
    %45 = vector.shape_cast %44 : vector<1x1x8x128xf32> to vector<8x128xf32>
    %46 = vector.shape_cast %43 : vector<8x128xf32> to vector<1x1x8x128xf32>
    tpu.vector_store %arg2[%c0_6, %c0_7, %c0_8, %c0_9], %46 {strides = array<i32>} : memref<1x2x8x128xf32, #tpu.memory_space<vmem>>, vector<1x1x8x128xf32>,
    %47 = vector.broadcast %40 : f32 to vector<1x1xf32>
    %48 = vector.shape_cast %47 : vector<1x1xf32> to vector<1x1xf32>
    %49 = vector.broadcast %48 : vector<1x1xf32> to vector<8x128xf32>
    %c0_10 = arith.constant 0 : index
    %c1 = arith.constant 1 : index
    %c0_11 = arith.constant 0 : index
    %c0_12 = arith.constant 0 : index
    %50 = vector.load %arg2[%c0_10, %c1, %c0_11, %c0_12] : memref<1x2x8x128xf32, #tpu.memory_space<vmem>>, vector<1x1x8x128xf32>
    %51 = vector.shape_cast %50 : vector<1x1x8x128xf32> to vector<8x128xf32>
    %52 = vector.shape_cast %49 : vector<8x128xf32> to vector<1x1x8x128xf32>
    tpu.vector_store %arg2[%c0_10, %c1, %c0_11, %c0_12], %52 {strides = array<i32>} : memref<1x2x8x128xf32, #tpu.memory_space<vmem>>, vector<1x1x8x128xf32>,
    return
  }
  func.func @transform_0(%arg0: i32) -> (i32, i32, i32) {
    %c0_i32 = arith.constant 0 : i32
    %c0_i32_0 = arith.constant 0 : i32
    %c0_i32_1 = arith.constant 0 : i32
    return %arg0, %c0_i32, %c0_i32_0 : i32, i32, i32
  }
  func.func @transform_1(%arg0: i32) -> (i32, i32, i32, i32) {
    %c0_i32 = arith.constant 0 : i32
    %c0_i32_0 = arith.constant 0 : i32
    %c0_i32_1 = arith.constant 0 : i32
    %c0_i32_2 = arith.constant 0 : i32
    return %arg0, %c0_i32, %c0_i32_0, %c0_i32_1 : i32, i32, i32, i32
  }
}

</mosaic_0001>

<llo_original>
// kernel: tpu_custom_call.1
$region0: #{tpu_custom_call.1}
  #allocation0 [shape = 'u32[]', space=smem, size = 0x4, offset = 0x4, fixed_abs, tag = 'smem constant byte address 0x4 - core index']
  #allocation1 [shape = 'u32[72,128]{1,0:T(1,128)}', space=vmem, size = 0x9000, scoped, tag = 'internal scratch']
  %s0 = inlined_call_operand.hbm [shape: f32[1,8,256], index: 0, kind: input, shape index: {}]
  %s1 = inlined_call_operand.hbm [shape: f32[1,2,8,128], index: 1, kind: output, shape index: {}]
  %s2 = sld [smem:[#allocation0]]
  $region18: #{tpu_custom_call.1} parent=0
    _
  %s4 = ssub.s32 1, %s2
  %s5 = scalar_select 0, %s4, %s2
  $region1: #{tpu_custom_call.1} parent=0
    #allocation2 [shape = 'u8[8192]{0}', space=vmem, size = 0x2000, scoped, tag = 'input window, operand 0, single buffered']
    #allocation3 [shape = 's32[1]{0}', space=sflag, size = 0x4, scoped, tag = 'scoped memory for tpu_custom_call.1']
    #allocation4 [shape = 's32[1]{0}', space=sflag, size = 0x4, scoped, tag = 'scoped memory for tpu_custom_call.1']
    #allocation5 [shape = 'u8[8192]{0}', space=vmem, size = 0x2000, scoped, tag = 'output window, operand 0, single buffered']
    %6 = vsyncpa [#allocation3], 0
    %7 = vsyncpa [#allocation4], 0
    // Predicated region
    $region2: #{tpu_custom_call.1} parent=1 // pred_check
      _
    $region3: #{tpu_custom_call.1} parent=1 // pred_check_branch
      %9 = sbr.rel (0) target = $region5
    $region4: #{tpu_custom_call.1} parent=1 // pred_region
      %11 = vsyncadd [#allocation3], 0
      %s13 = sshll.u32 %s0, 4
      %s14 = int_to_ptr.hbm [resolvable:$true] %s13
      %s15 = sshll.u32 [#allocation2], 4
      %s16 = int_to_ptr.vmem [resolvable:$true] %s15
      %18 = dma.hbm_to_vmem [thread:$0]  %s14, 256, %s16, [#allocation3]
    $region5: #{tpu_custom_call.1} parent=1 // pred_fallthru
      _
    // Predicated region
    $region6: #{tpu_custom_call.1} parent=1 // pred_check
      _
    $region7: #{tpu_custom_call.1} parent=1 // pred_check_branch
      %20 = sbr.rel (0) target = $region9
    $region8: #{tpu_custom_call.1} parent=1 // pred_region
      %22 = dma.done [#allocation3], 256
    $region9: #{tpu_custom_call.1} parent=1 // pred_fallthru
      _
    %v23 = vld [vmem:[#allocation2] sm:$0xff]
    %v24 = vld [vmem:[#allocation2 + $0x8] sm:$0xff]
    %27 = vrot.lane.b32.xlu0 %v23, 16
    %v28 = vpop.permute.xlu0 %27
    %29 = vrot.lane.b32.xlu0 %v24, 16
    %v30 = vpop.permute.xlu0 %29
    %vm31 = vcmask 130048
    %v32 = vsel %vm31, %v28, %v30
    %v35 = vsub.f32 %v23, %v28
    %v36 = vsub.f32 %v24, %v32
    %v37 = vmul.f32 %v35, %v35
    %v38 = vmul.f32 %v36, %v36
    %41 = vrot.lane.b32.xlu0 %v37, 112
    %v42 = vpop.permute.xlu0 %41
    %43 = vrot.lane.b32.xlu0 %v38, 112
    %v44 = vpop.permute.xlu0 %43
    %vm45 = vcmask 916480
    %v46 = vsel %vm45, %v42, %v44
    %v49 = vsel %vm45, %v44, 0.0
    %v50 = vadd.f32 %v46, %v49
    %51 = vadd.xlane.f32.xlu0 %v50
    %v52 = vpop.xlane.xlu0 %51
    %v53 = vrot.slane %v52, 4
    %v54 = vadd.f32 %v52, %v53
    %v55 = vrot.slane %v54, 2
    %v56 = vadd.f32 %v54, %v55
    %v57 = vrot.slane %v56, 1
    %v58 = vadd.f32 %v56, %v57
    %s59 = vtos %v58
    %60 = vrot.lane.b32.xlu0 %v23, 1
    %v61 = vpop.permute.xlu0 %60
    %62 = vrot.lane.b32.xlu0 %v24, 1
    %v63 = vpop.permute.xlu0 %62
    %vm64 = vcmask 7168
    %v65 = vsel %vm64, %v61, %v63
    %v68 = vsub.f32 %v23, %v61
    %v69 = vsub.f32 %v24, %v65
    %v70 = vlaneseq
    %v71 = vand.u32 %v70, 127
    %v72 = vadd.s32 %v71, 128
    %vm73 = vcmp.lt.s32.totalorder %v71, 0
    %v74 = vsub.s32 0, %v71
    %v75 = vsel %vm73, %v74, %v71
    %v76 = vshrl.u32 %v75, 4
    %v77 = vand.u32 %v75, 15
    %v78 = vsub.s32 0, %v77
    %v79 = vsel %vm73, %v78, %v77
    %vm80 = vcmp.lt.s32.totalorder %v72, 0
    %v81 = vsub.s32 0, %v72
    %v82 = vsel %vm80, %v81, %v72
    %v83 = vshrl.u32 %v82, 4
    %v84 = vand.u32 %v82, 15
    %v85 = vsub.s32 0, %v84
    %v86 = vsel %vm80, %v85, %v84
    %vm87 = vcmp.ne.s32.totalorder %v79, 0
    %vm88 = vcmp.ne.s32.totalorder %v86, 0
    %vm89 = vcmp.lt.s32.totalorder %v79, 0
    %vm90 = vcmp.lt.s32.totalorder %v86, 0
    %vm91 = vmand %vm89, %vm87
    %vm92 = vmand %vm90, %vm88
    %v93 = vadd.s32 %v79, 16
    %v94 = vadd.s32 %v86, 16
    %v95 = vsel %vm91, %v93, %v79
    %v96 = vsel %vm92, %v94, %v86
    %vm97 = vcmp.ne.s32.totalorder %v95, 15
    %vm98 = vcmp.ne.s32.totalorder %v96, 15
    %v99 = vsel %vm97, 1, 0
    %v100 = vsel %vm98, 1, 0
    %v101 = vcvt.s32.f32 %v99
    %v102 = vcvt.s32.f32 %v100
    %105 = vrot.lane.b32.xlu0 %v101, 1
    %v106 = vpop.permute.xlu0 %105
    %107 = vrot.lane.b32.xlu0 %v102, 1
    %v108 = vpop.permute.xlu0 %107
    %v109 = vsel %vm64, %v106, %v108
    %v112 = vmul.f32 %v68, %v106
    %v113 = vmul.f32 %v69, %v109
    %v114 = vmul.f32 %v112, %v112
    %v115 = vmul.f32 %v113, %v113
    %118 = vrot.lane.b32.xlu0 %v114, 127
    %v119 = vpop.permute.xlu0 %118
    %120 = vrot.lane.b32.xlu0 %v115, 127
    %v121 = vpop.permute.xlu0 %120
    %vm122 = vcmask 1039360
    %v123 = vsel %vm122, %v119, %v121
    %v126 = vsel %vm122, %v121, 0.0
    %v127 = vadd.f32 %v123, %v126
    %128 = vadd.xlane.f32.xlu0 %v127
    %v129 = vpop.xlane.xlu0 %128
    %v130 = vrot.slane %v129, 4
    %v131 = vadd.f32 %v129, %v130
    %v132 = vrot.slane %v131, 2
    %v133 = vadd.f32 %v131, %v132
    %v134 = vrot.slane %v133, 1
    %v135 = vadd.f32 %v133, %v134
    %s136 = vtos %v135
    %v137 = vstv %s59
    %138 = vst [vmem:[#allocation5] sm:$0xff] %v137
    %v139 = vstv %s136
    %s140 = scalar_lea.vmem [#allocation5], 8
    %141 = vst [vmem:[%s140] sm:$0xff] %v139
    // Predicated region
    $region10: #{tpu_custom_call.1} parent=1 // pred_check
      _
    $region11: #{tpu_custom_call.1} parent=1 // pred_check_branch
      %143 = sbr.rel (0) target = $region13
    $region12: #{tpu_custom_call.1} parent=1 // pred_region
      %145 = vsyncadd [#allocation4], 0
      %s146 = sshll.u32 [#allocation5], 4
      %s147 = int_to_ptr.vmem [resolvable:$true] %s146
      %s148 = sshll.u32 %s1, 4
      %s149 = int_to_ptr.hbm [resolvable:$true] %s148
      %154 = dma.vmem_to_hbm [thread:$0]  %s147, 256, %s149, [#allocation4], 128, 128, 8
    $region13: #{tpu_custom_call.1} parent=1 // pred_fallthru
      _
    // Predicated region
    $region14: #{tpu_custom_call.1} parent=1 // pred_check
      _
    $region15: #{tpu_custom_call.1} parent=1 // pred_check_branch
      %156 = sbr.rel (0) target = $region17
    $region16: #{tpu_custom_call.1} parent=1 // pred_region
      %158 = dma.done [#allocation4], 256
    $region17: #{tpu_custom_call.1} parent=1 // pred_fallthru
      _
    %159 = vsyncpa [#allocation3], 1
    %160 = vsyncpa [#allocation4], 1

</llo_original>
